<compile_context>
chip_gen: v6e
topology: v6e:2x2x1
jax: 0.10.0
libtpu: 0.0.40
codegen_flags: <defaults>
</compile_context>

<pallas_src>
import jax
import jax.numpy as jnp
from jax import lax
from jax.experimental import pallas as pl
from jax.experimental.pallas import tpu as pltpu


def ia3_linear_kernel(x_ref, s_ref, w_ref, b_ref, out_ref, acc_ref):
    # x_ref:   (1, tm, tk)   input slab for this batch element
    # s_ref:   (1, 1, tk)    ia3 scaling slab (1 + delta) for this batch element
    # w_ref:   (tn, tk)      base Linear weight tile, PyTorch (out, in) layout
    # b_ref:   (1, tn)       bias tile
    # out_ref: (1, tm, tn)   output tile (resident across the K grid axis)
    # acc_ref: (tm, tn) f32  K-accumulator scratch
    k = pl.program_id(3)

    @pl.when(k == 0)
    def _():
        # Fold the bias into the accumulator init so the finalize is a pure cast.
        acc_ref[...] = jnp.broadcast_to(
            b_ref[...].astype(jnp.float32), acc_ref.shape
        )

    # Fused IA3 scaling: (tm, tk) * (1, tk) broadcast (once per tile), then an
    # MXU matmul contracting the last dims of both operands (x @ W.T without
    # ever transposing the weight in HBM).
    xs = x_ref[0] * s_ref[0]
    acc_ref[...] += lax.dot_general(
        xs,
        w_ref[...],
        dimension_numbers=(((1,), (1,)), ((), ())),
        preferred_element_type=jnp.float32,
    )

    @pl.when(k == pl.num_programs(3) - 1)
    def _():
        out_ref[0] = acc_ref[...].astype(out_ref.dtype)


def _pick_tile(dim, preferred, align):
    """Largest multiple of `align` that divides `dim` and is <= `preferred`;
    falls back to the full extent (always a legal block shape)."""
    if dim <= preferred:
        return dim
    t = (preferred // align) * align
    while t >= align:
        if dim % t == 0:
            return t
        t -= align
    return dim


def ia3_linear_forward(x, delta1, weight, bias, *, tm=256, tn=512, tk=512):
    """x: (bs, S, Fin), delta1: (bs, Fin), weight: (Fout, Fin) [PyTorch layout],
    bias: (Fout,).  Returns (result, (ia3_scaling, ia3_delta_2))."""
    bs, S, Fin = x.shape
    Fout = weight.shape[0]

    # Tiny (bs, Fin) tensor: compute in f32 in plain JAX (so small deltas survive
    # a low-precision x dtype), reuse it as the kernel input.
    ia3_scaling = 1.0 + delta1.astype(jnp.float32)
    scale_in = ia3_scaling.astype(x.dtype).reshape(bs, 1, Fin)

    tm = _pick_tile(S, tm, 8)
    tn = _pick_tile(Fout, tn, 128)
    tk = _pick_tile(Fin, tk, 128)
    grid = (bs, S // tm, Fout // tn, Fin // tk)

    b2d = bias.reshape(1, Fout)

    result = pl.pallas_call(
        ia3_linear_kernel,
        out_shape=jax.ShapeDtypeStruct((bs, S, Fout), x.dtype),
        grid_spec=pltpu.PrefetchScalarGridSpec(
            num_scalar_prefetch=0,
            grid=grid,
            in_specs=[
                pl.BlockSpec((1, tm, tk), lambda b, i, j, k: (b, i, k)),   # x
                pl.BlockSpec((1, 1, tk), lambda b, i, j, k: (b, 0, k)),    # scale
                pl.BlockSpec((tn, tk), lambda b, i, j, k: (j, k)),         # weight
                pl.BlockSpec((1, tn), lambda b, i, j, k: (0, j)),          # bias
            ],
            out_specs=pl.BlockSpec((1, tm, tn), lambda b, i, j, k: (b, i, j)),
            scratch_shapes=[pltpu.VMEM((tm, tn), jnp.float32)],
        ),
        compiler_params=pltpu.CompilerParams(
            dimension_semantics=("parallel", "parallel", "parallel", "arbitrary"),
            vmem_limit_bytes=48 * 1024 * 1024,
        ),
    )(x, scale_in, weight, b2d)

    ia3_delta_2 = delta1.reshape(bs, -1)
    return result, (ia3_scaling.astype(delta1.dtype), ia3_delta_2)


def _reference(x, delta1, weight, bias):
    scale = 1.0 + delta1
    return jnp.einsum("bsi,oi->bso", x * scale[:, None, :], weight) + bias


if __name__ == "__main__":
    key = jax.random.PRNGKey(0)

    # --- small test (shapes implied by the module's forward) -----------------
    bs, S, Fin, Fout = 2, 8, 32, 32
    kx, kd, kw, kb = jax.random.split(key, 4)
    x = jax.random.normal(kx, (bs, S, Fin), dtype=jnp.float32)
    query_embeds_1 = 0.1 * jax.random.normal(kd, (bs, Fin), dtype=jnp.float32)
    weight = (1.0 / Fin) * jax.random.normal(kw, (Fout, Fin), dtype=jnp.float32)
    bias = 0.01 * jax.random.normal(kb, (Fout,), dtype=jnp.float32)

    result, (ia3_scaling, ia3_delta_2) = ia3_linear_forward(x, query_embeds_1, weight, bias)
    jax.block_until_ready(result)
    jax.block_until_ready(ia3_scaling)

    ref = _reference(x, query_embeds_1, weight, bias)
    assert jnp.allclose(result, ref, atol=1e-5, rtol=1e-5)
    assert jnp.allclose(ia3_scaling, 1.0 + query_embeds_1, atol=1e-6)
    assert jnp.allclose(ia3_delta_2, query_embeds_1)

    # --- second check that actually exercises the M/N/K tiling path ----------
    bs2, S2, Fin2, Fout2 = 2, 16, 256, 384
    k1, k2, k3, k4 = jax.random.split(jax.random.PRNGKey(1), 4)
    x2 = jax.random.normal(k1, (bs2, S2, Fin2), dtype=jnp.float32)
    d2 = 0.1 * jax.random.normal(k2, (bs2, Fin2), dtype=jnp.float32)
    w2 = (1.0 / Fin2) * jax.random.normal(k3, (Fout2, Fin2), dtype=jnp.float32)
    b2 = 0.01 * jax.random.normal(k4, (Fout2,), dtype=jnp.float32)

    result2, _ = ia3_linear_forward(x2, d2, w2, b2, tm=8, tn=128, tk=128)
    jax.block_until_ready(result2)
    assert jnp.allclose(result2, _reference(x2, d2, w2, b2), atol=1e-4, rtol=1e-4)

    print("KERNEL_OK")
</pallas_src>

<mosaic_0001>
module attributes {stable_mosaic.version = 11 : i64} {
  func.func @ia3_linear_kernel(%arg0: i32, %arg1: i32, %arg2: i32, %arg3: i32, %arg4: memref<1x8x32xf32, #tpu.memory_space<vmem>>, %arg5: memref<1x1x32xf32, #tpu.memory_space<vmem>>, %arg6: memref<32x32xf32, #tpu.memory_space<vmem>>, %arg7: memref<1x32xf32, #tpu.memory_space<vmem>>, %arg8: memref<1x8x32xf32, #tpu.memory_space<vmem>>, %arg9: memref<8x32xf32, #tpu.memory_space<vmem>>) attributes {dimension_semantics = [#tpu.dimension_semantics<parallel>, #tpu.dimension_semantics<parallel>, #tpu.dimension_semantics<parallel>, #tpu.dimension_semantics<arbitrary>], iteration_bounds = array<i64: 2, 1, 1, 1>, scalar_prefetch = 0 : i64, scratch_operands = 1 : i64, tpu.core_type = #tpu.core_type<tc>, window_params = [{transform_indices = @transform_0, window_bounds = array<i64: 1, 8, 32>}, {transform_indices = @transform_1, window_bounds = array<i64: 1, 1, 32>}, {transform_indices = @transform_2, window_bounds = array<i64: 32, 32>}, {transform_indices = @transform_3, window_bounds = array<i64: 1, 32>}, {transform_indices = @transform_4, window_bounds = array<i64: 1, 8, 32>}]} {
    %c0_i32 = arith.constant 0 : i32
    %0 = arith.cmpi eq, %arg3, %c0_i32 : i32
    %1 = arith.extui %0 : i1 to i32
    %c0_i32_0 = arith.constant 0 : i32
    %2 = arith.cmpi ne, %1, %c0_i32_0 : i32
    scf.if %2 {
      %c0_14 = arith.constant 0 : index
      %c0_15 = arith.constant 0 : index
      %17 = vector.load %arg7[%c0_14, %c0_15] : memref<1x32xf32, #tpu.memory_space<vmem>>, vector<1x32xf32>
      %18 = vector.shape_cast %17 : vector<1x32xf32> to vector<1x32xf32>
      %19 = vector.broadcast %18 : vector<1x32xf32> to vector<8x32xf32>
      %c0_16 = arith.constant 0 : index
      %c0_17 = arith.constant 0 : index
      %20 = vector.load %arg9[%c0_16, %c0_17] : memref<8x32xf32, #tpu.memory_space<vmem>>, vector<8x32xf32>
      tpu.vector_store %arg9[%c0_16, %c0_17], %19 {strides = array<i32>} : memref<8x32xf32, #tpu.memory_space<vmem>>, vector<8x32xf32>,
    } else {
    }
    %c0 = arith.constant 0 : index
    %c0_1 = arith.constant 0 : index
    %c0_2 = arith.constant 0 : index
    %3 = vector.load %arg4[%c0, %c0_1, %c0_2] : memref<1x8x32xf32, #tpu.memory_space<vmem>>, vector<1x8x32xf32>
    %4 = vector.shape_cast %3 : vector<1x8x32xf32> to vector<8x32xf32>
    %c0_3 = arith.constant 0 : index
    %c0_4 = arith.constant 0 : index
    %c0_5 = arith.constant 0 : index
    %5 = vector.load %arg5[%c0_3, %c0_4, %c0_5] : memref<1x1x32xf32, #tpu.memory_space<vmem>>, vector<1x1x32xf32>
    %6 = vector.shape_cast %5 : vector<1x1x32xf32> to vector<1x32xf32>
    %7 = vector.broadcast %6 : vector<1x32xf32> to vector<8x32xf32>
    %8 = arith.mulf %4, %7 : vector<8x32xf32>
    %c0_6 = arith.constant 0 : index
    %c0_7 = arith.constant 0 : index
    %9 = vector.load %arg9[%c0_6, %c0_7] : memref<8x32xf32, #tpu.memory_space<vmem>>, vector<8x32xf32>
    %c0_8 = arith.constant 0 : index
    %c0_9 = arith.constant 0 : index
    %10 = vector.load %arg6[%c0_8, %c0_9] : memref<32x32xf32, #tpu.memory_space<vmem>>, vector<32x32xf32>
    %cst = arith.constant dense<0.000000e+00> : vector<8x32xf32>
    %11 = tpu.matmul %8, %10, %cst {dimension_numbers = #tpu.dot_dimension_numbers<[1], [1], [0], [0], [0, 0, 1, 0], [], []>} : vector<8x32xf32>, vector<32x32xf32>, vector<8x32xf32> -> vector<8x32xf32>
    %12 = arith.addf %9, %11 : vector<8x32xf32>
    %c0_10 = arith.constant 0 : index
    %c0_11 = arith.constant 0 : index
    %13 = vector.load %arg9[%c0_10, %c0_11] : memref<8x32xf32, #tpu.memory_space<vmem>>, vector<8x32xf32>
    tpu.vector_store %arg9[%c0_10, %c0_11], %12 {strides = array<i32>} : memref<8x32xf32, #tpu.memory_space<vmem>>, vector<8x32xf32>,
    %c0_i32_12 = arith.constant 0 : i32
    %14 = arith.cmpi eq, %arg3, %c0_i32_12 : i32
    %15 = arith.extui %14 : i1 to i32
    %c0_i32_13 = arith.constant 0 : i32
    %16 = arith.cmpi ne, %15, %c0_i32_13 : i32
    scf.if %16 {
      %c0_14 = arith.constant 0 : index
      %c0_15 = arith.constant 0 : index
      %17 = vector.load %arg9[%c0_14, %c0_15] : memref<8x32xf32, #tpu.memory_space<vmem>>, vector<8x32xf32>
      %c0_16 = arith.constant 0 : index
      %c0_17 = arith.constant 0 : index
      %c0_18 = arith.constant 0 : index
      %18 = vector.load %arg8[%c0_16, %c0_17, %c0_18] : memref<1x8x32xf32, #tpu.memory_space<vmem>>, vector<1x8x32xf32>
      %19 = vector.shape_cast %18 : vector<1x8x32xf32> to vector<8x32xf32>
      %20 = vector.shape_cast %17 : vector<8x32xf32> to vector<1x8x32xf32>
      tpu.vector_store %arg8[%c0_16, %c0_17, %c0_18], %20 {strides = array<i32>} : memref<1x8x32xf32, #tpu.memory_space<vmem>>, vector<1x8x32xf32>,
    } else {
    }
    return
  }
  func.func @transform_0(%arg0: i32, %arg1: i32, %arg2: i32, %arg3: i32) -> (i32, i32, i32) {
    %c0_i32 = arith.constant 0 : i32
    return %arg0, %arg1, %arg3 : i32, i32, i32
  }
  func.func @transform_1(%arg0: i32, %arg1: i32, %arg2: i32, %arg3: i32) -> (i32, i32, i32) {
    %c0_i32 = arith.constant 0 : i32
    %c0_i32_0 = arith.constant 0 : i32
    return %arg0, %c0_i32, %arg3 : i32, i32, i32
  }
  func.func @transform_2(%arg0: i32, %arg1: i32, %arg2: i32, %arg3: i32) -> (i32, i32) {
    %c0_i32 = arith.constant 0 : i32
    return %arg2, %arg3 : i32, i32
  }
  func.func @transform_3(%arg0: i32, %arg1: i32, %arg2: i32, %arg3: i32) -> (i32, i32) {
    %c0_i32 = arith.constant 0 : i32
    %c0_i32_0 = arith.constant 0 : i32
    return %c0_i32, %arg2 : i32, i32
  }
  func.func @transform_4(%arg0: i32, %arg1: i32, %arg2: i32, %arg3: i32) -> (i32, i32, i32) {
    %c0_i32 = arith.constant 0 : i32
    return %arg0, %arg1, %arg2 : i32, i32, i32
  }
}

</mosaic_0001>

<llo_original>
// kernel: tpu_custom_call.1
$region0: #{tpu_custom_call.1}
  #allocation0 [shape = 'u32[]', space=smem, size = 0x4, offset = 0x4, fixed_abs, tag = 'smem constant byte address 0x4 - core index']
  #allocation1 [shape = 'u32[144,128]{1,0:T(1,128)}', space=vmem, size = 0x12000, scoped, tag = 'internal scratch']
  #allocation2 [shape = 'f32[8,32]{1,0:T(8,128)}', space=vmem, size = 0x1000, scoped, tag = 'scratch operand']
  %s0 = inlined_call_operand.hbm [shape: f32[2,8,32], index: 0, kind: input, shape index: {}]
  %s1 = inlined_call_operand.hbm [shape: f32[2,1,32], index: 1, kind: input, shape index: {}]
  %s2 = inlined_call_operand.hbm [shape: f32[32,32], index: 2, kind: input, shape index: {}]
  %s3 = inlined_call_operand.vmem [shape: f32[1,32], index: 3, kind: input, shape index: {}]
  %s4 = inlined_call_operand.hbm [shape: f32[2,8,32], index: 4, kind: output, shape index: {}]
  %s5 = sld [smem:[#allocation0]]
  $region69: #{tpu_custom_call.1} parent=0
    _
  %s7 = ssub.s32 1, %s5
  %s8 = scalar_select 0, %s7, %s5
  $region1: #{tpu_custom_call.1} parent=0
    #allocation3 [shape = 'u8[8192]{0}', space=vmem, size = 0x2000, scoped, tag = 'input window, operand 0']
    #allocation4 [shape = 's32[2]{0}', space=sflag, size = 0x8, scoped, tag = 'scoped memory for tpu_custom_call.1']
    #allocation5 [shape = 's32[2]{0}', space=sflag, size = 0x8, scoped, tag = 'scoped memory for tpu_custom_call.1']
    #allocation6 [shape = 'u8[1024]{0}', space=vmem, size = 0x400, scoped, tag = 'input window, operand 1']
    #allocation7 [shape = 's32[2]{0}', space=sflag, size = 0x8, scoped, tag = 'scoped memory for tpu_custom_call.1']
    #allocation8 [shape = 'u8[16384]{0}', space=vmem, size = 0x4000, scoped, tag = 'input window, operand 2, single buffered']
    #allocation9 [shape = 'u8[8192]{0}', space=vmem, size = 0x2000, scoped, tag = 'output window, operand 0']
    %9 = vsyncpa [#allocation4], 0
    %s10 = scalar_lea.sflag [#allocation4], 1
    %11 = vsyncpa %s10, 0
    %12 = vsyncpa [#allocation7], 0
    %s13 = scalar_lea.sflag [#allocation7], 1
    %14 = vsyncpa %s13, 0
    %15 = vsyncpa [#allocation5], 0
    %s16 = scalar_lea.sflag [#allocation5], 1
    %17 = vsyncpa %s16, 0
    loop: start=0, step=1, limit=4
    $region2: #{tpu_custom_call.1} parent=1 // loop_pre_header
      _
    $region3: #{tpu_custom_call.1} parent=1 // loop_header
      %s19 = sphi 0, %s23
      %p20 = scmp.ge.s32.totalorder %s19, 4
      %s26 = sphi 0, %s52
      %s27 = sphi 0, %s48
      %s28 = sphi 0, %s44
      %s29 = sphi 0, %s40
      %s30 = sphi 0, %s26
      %s31 = sphi 0, %s27
      %s32 = sphi 0, %s28
      %s33 = sphi 0, %s29
      %s34 = sphi 0, %s30
      %s35 = sphi 0, %s31
      %s36 = sphi 0, %s32
      %s37 = sphi 0, %s33
      %s59 = sphi 0, %s61
      %s62 = sphi 0, %s59
      %s63 = sphi 0, %s62
      %s79 = sphi 0, %s63
      %s87 = sphi 0, %s89
      %s90 = sphi 0, %s87
      %s91 = sphi 0, %s90
      %s107 = sphi 0, %s91
      %s115 = sphi 0, %s117
      %s118 = sphi 0, %s115
      %s119 = sphi 0, %s118
      %s135 = sphi 0, %s119
      %s141 = sphi 0, %s143
      %s144 = sphi 0, %s141
      %s145 = sphi 0, %s144
      %s161 = sphi 0, %s145
      %s171 = sphi 0, %s173
      %s174 = sphi 0, %s171
      %s175 = sphi 0, %s174
      %s191 = sphi 0, %s175
    $region4: #{tpu_custom_call.1} parent=1 // loop_header_branch
      %22 = sbr.rel (%p20) target = $region8
    $region5: #{tpu_custom_call.1} parent=1 // loop_body
      %s24 = ssub.s32 %s19, 1
      %s25 = ssub.s32 %s19, 2
      %s38 = sadd.s32 1, %s29
      %p39 = scmp.ge.s32.totalorder %s38, 1
      %s40 = scalar_select %p39, 0, %s38
      %s41 = sadd.s32 1, %s28
      %s42 = scalar_select %p39, %s41, %s28
      %p43 = scmp.ge.s32.totalorder %s42, 1
      %s44 = scalar_select %p43, 0, %s42
      %s45 = sadd.s32 1, %s27
      %s46 = scalar_select %p43, %s45, %s27
      %p47 = scmp.ge.s32.totalorder %s46, 1
      %s48 = scalar_select %p47, 0, %s46
      %s49 = sadd.s32 1, %s26
      %s50 = scalar_select %p47, %s49, %s26
      %p51 = scmp.ge.s32.totalorder %s50, 2
      %s52 = scalar_select %p51, 0, %s50
      %s53 = ssub.s32 %s26, %s52
      %s54 = ssub.s32 %s27, %s48
      %s55 = sor.u32 %s53, %s54
      %s56 = ssub.s32 %s29, %s40
      %s57 = sor.u32 %s55, %s56
      %p58 = scmp.eq.s32.totalorder %s57, 0
      %s60 = sadd.s32 %s59, 1
      %s61 = scalar_select %p58, %s59, %s60
      %p64 = pneg %p58
      %p65 = scmp.eq.s32.totalorder %s19, 1
      %p66 = por %p64, %p65
      %p67 = scmp.ne.s32.totalorder %s59, %s62
      %p68 = scmp.eq.s32.totalorder %s19, 0
      %p69 = por %p67, %p68
      %p70 = scmp.ne.s32.totalorder %s59, %s62
      %p71 = scmp.eq.s32.totalorder %s24, 1
      %p72 = por %p70, %p71
      %p73 = scmp.ne.s32.totalorder %s62, %s63
      %p74 = scmp.eq.s32.totalorder %s24, 0
      %p75 = por %p73, %p74
      %p76 = scmp.ne.s32.totalorder %s62, %s63
      %p77 = scmp.eq.s32.totalorder %s25, 1
      %p78 = por %p76, %p77
      %p80 = scmp.ne.s32.totalorder %s63, %s79
      %p81 = scmp.eq.s32.totalorder %s25, 0
      %p82 = por %p80, %p81
      %s83 = ssub.s32 %s26, %s52
      %s84 = ssub.s32 %s29, %s40
      %s85 = sor.u32 %s83, %s84
      %p86 = scmp.eq.s32.totalorder %s85, 0
      %s88 = sadd.s32 %s87, 1
      %s89 = scalar_select %p86, %s87, %s88
      %p92 = pneg %p86
      %p93 = scmp.eq.s32.totalorder %s19, 1
      %p94 = por %p92, %p93
      %p95 = scmp.ne.s32.totalorder %s87, %s90
      %p96 = scmp.eq.s32.totalorder %s19, 0
      %p97 = por %p95, %p96
      %p98 = scmp.ne.s32.totalorder %s87, %s90
      %p99 = scmp.eq.s32.totalorder %s24, 1
      %p100 = por %p98, %p99
      %p101 = scmp.ne.s32.totalorder %s90, %s91
      %p102 = scmp.eq.s32.totalorder %s24, 0
      %p103 = por %p101, %p102
      %p104 = scmp.ne.s32.totalorder %s90, %s91
      %p105 = scmp.eq.s32.totalorder %s25, 1
      %p106 = por %p104, %p105
      %p108 = scmp.ne.s32.totalorder %s91, %s107
      %p109 = scmp.eq.s32.totalorder %s25, 0
      %p110 = por %p108, %p109
      %s111 = ssub.s32 %s28, %s44
      %s112 = ssub.s32 %s29, %s40
      %s113 = sor.u32 %s111, %s112
      %p114 = scmp.eq.s32.totalorder %s113, 0
      %s116 = sadd.s32 %s115, 1
      %s117 = scalar_select %p114, %s115, %s116
      %p120 = pneg %p114
      %p121 = scmp.eq.s32.totalorder %s19, 1
      %p122 = por %p120, %p121
      %p123 = scmp.ne.s32.totalorder %s115, %s118
      %p124 = scmp.eq.s32.totalorder %s19, 0
      %p125 = por %p123, %p124
      %p126 = scmp.ne.s32.totalorder %s115, %s118
      %p127 = scmp.eq.s32.totalorder %s24, 1
      %p128 = por %p126, %p127
      %p129 = scmp.ne.s32.totalorder %s118, %s119
      %p130 = scmp.eq.s32.totalorder %s24, 0
      %p131 = por %p129, %p130
      %p132 = scmp.ne.s32.totalorder %s118, %s119
      %p133 = scmp.eq.s32.totalorder %s25, 1
      %p134 = por %p132, %p133
      %p136 = scmp.ne.s32.totalorder %s119, %s135
      %p137 = scmp.eq.s32.totalorder %s25, 0
      %p138 = por %p136, %p137
      %s139 = ssub.s32 %s28, %s44
      %p140 = scmp.eq.s32.totalorder %s139, 0
      %s142 = sadd.s32 %s141, 1
      %s143 = scalar_select %p140, %s141, %s142
      %p146 = pneg %p140
      %p147 = scmp.eq.s32.totalorder %s19, 1
      %p148 = por %p146, %p147
      %p149 = scmp.ne.s32.totalorder %s141, %s144
      %p150 = scmp.eq.s32.totalorder %s19, 0
      %p151 = por %p149, %p150
      %p152 = scmp.ne.s32.totalorder %s141, %s144
      %p153 = scmp.eq.s32.totalorder %s24, 1
      %p154 = por %p152, %p153
      %p155 = scmp.ne.s32.totalorder %s144, %s145
      %p156 = scmp.eq.s32.totalorder %s24, 0
      %p157 = por %p155, %p156
      %p158 = scmp.ne.s32.totalorder %s144, %s145
      %p159 = scmp.eq.s32.totalorder %s25, 1
      %p160 = por %p158, %p159
      %p162 = scmp.ne.s32.totalorder %s145, %s161
      %p163 = scmp.eq.s32.totalorder %s25, 0
      %p164 = por %p162, %p163
      %s165 = ssub.s32 %s26, %s52
      %s166 = ssub.s32 %s27, %s48
      %s167 = sor.u32 %s165, %s166
      %s168 = ssub.s32 %s28, %s44
      %s169 = sor.u32 %s167, %s168
      %p170 = scmp.eq.s32.totalorder %s169, 0
      %s172 = sadd.s32 %s171, 1
      %s173 = scalar_select %p170, %s171, %s172
      %p176 = pneg %p170
      %p177 = scmp.eq.s32.totalorder %s19, 1
      %p178 = por %p176, %p177
      %p179 = scmp.ne.s32.totalorder %s171, %s174
      %p180 = scmp.eq.s32.totalorder %s19, 0
      %p181 = por %p179, %p180
      %p182 = scmp.ne.s32.totalorder %s171, %s174
      %p183 = scmp.eq.s32.totalorder %s24, 1
      %p184 = por %p182, %p183
      %p185 = scmp.ne.s32.totalorder %s174, %s175
      %p186 = scmp.eq.s32.totalorder %s24, 0
      %p187 = por %p185, %p186
      %p188 = scmp.ne.s32.totalorder %s174, %s175
      %p189 = scmp.eq.s32.totalorder %s25, 1
      %p190 = por %p188, %p189
      %p192 = scmp.ne.s32.totalorder %s175, %s191
      %p193 = scmp.eq.s32.totalorder %s25, 0
      %p194 = por %p192, %p193
      %p195 = scmp.le.s32.totalorder 1, %s19
      %p196 = scmp.lt.s32.totalorder %s19, 3
      %p197 = pnand %p195, %p196
      %p198 = pneg %p197
      // Predicated region
      $region9: #{tpu_custom_call.1} parent=5 // pred_check
        _
      $region10: #{tpu_custom_call.1} parent=5 // pred_check_branch
        %200 = sbr.rel (%p197) target = $region12
      $region11: #{tpu_custom_call.1} parent=5 // pred_region
        %s201 = ssub.s32 %s19, 1
        // Predicated region
        $region13: #{tpu_custom_call.1} parent=11 // pred_check
          %p202 = pneg %p131
        $region14: #{tpu_custom_call.1} parent=11 // pred_check_branch
          %204 = sbr.rel (%p202) target = $region16
        $region15: #{tpu_custom_call.1} parent=11 // pred_region
          %s205 = smul.u32 4, %s32
          %s207 = ssub.s32 512, 512
          %208 = vsyncadd [#allocation7], %s207
          %s209 = sadd.s32 %s33, %s205
          %s210 = smul.addr %s209, 128
          %s211 = scalar_lea.hbm %s2, %s210
          %s212 = sshll.u32 [#allocation8], 4
          %s213 = int_to_ptr.vmem [resolvable:$true] %s212
          %218 = dma.hbm_to_vmem [thread:$0]  %s211, 512, %s213, [#allocation7], 128, 128, 8
        $region16: #{tpu_custom_call.1} parent=11 // pred_fallthru
          _
        // Predicated region
        $region17: #{tpu_custom_call.1} parent=11 // pred_check
          %p219 = pneg %p157
        $region18: #{tpu_custom_call.1} parent=11 // pred_check_branch
          %221 = sbr.rel (%p219) target = $region20
        $region19: #{tpu_custom_call.1} parent=11 // pred_region
          %p222 = scmp.lt.s32.totalorder %s32, 0
          %s223 = scalar_select %p222, %s32, 0
          %s224 = scalar_lea.vmem %s3, %s223
        $region20: #{tpu_custom_call.1} parent=11 // pred_fallthru
          _
      $region12: #{tpu_custom_call.1} parent=5 // pred_fallthru
        _
      %p225 = scmp.lt.s32.totalorder %s19, 2
      // Predicated region
      $region21: #{tpu_custom_call.1} parent=5 // pred_check
        %p226 = pneg %p225
      $region22: #{tpu_custom_call.1} parent=5 // pred_check_branch
        %228 = sbr.rel (%p226) target = $region24
      $region23: #{tpu_custom_call.1} parent=5 // pred_region
        // Predicated region
        $region25: #{tpu_custom_call.1} parent=23 // pred_check
          %p229 = pneg %p69
        $region26: #{tpu_custom_call.1} parent=23 // pred_check_branch
          %231 = sbr.rel (%p229) target = $region28
        $region27: #{tpu_custom_call.1} parent=23 // pred_region
          %s232 = sand.u32 %s59, 1
          %s233 = scalar_lea.sflag [#allocation4], %s232
          %s234 = sand.u32 %s59, 1
          %s235 = smul.addr %s234, 8
          %s236 = scalar_lea.vmem [#allocation3], %s235
          %s238 = ssub.s32 128, 128
          %239 = vsyncadd %s233, %s238
          %s240 = sadd.s32 %s29, %s27
          %s241 = sadd.s32 %s240, %s26
          %s242 = smul.addr %s241, 128
          %s243 = scalar_lea.hbm %s0, %s242
          %s245 = sshll.u32 %s236, 4
          %s246 = int_to_ptr.vmem [resolvable:$true] %s245
          %248 = dma.hbm_to_vmem [thread:$0]  %s243, 128, %s246, %s233
        $region28: #{tpu_custom_call.1} parent=23 // pred_fallthru
          _
        // Predicated region
        $region29: #{tpu_custom_call.1} parent=23 // pred_check
          %p249 = pneg %p97
        $region30: #{tpu_custom_call.1} parent=23 // pred_check_branch
          %251 = sbr.rel (%p249) target = $region32
        $region31: #{tpu_custom_call.1} parent=23 // pred_region
          %s252 = sand.u32 %s19, 1
          %s253 = scalar_lea.sflag [#allocation7], %s252
          %s254 = sand.u32 %s87, 1
          %s255 = scalar_lea.vmem [#allocation6], %s254
          %s257 = ssub.s32 16, 16
          %258 = vsyncadd %s253, %s257
          %s259 = sadd.s32 %s29, %s26
          %s260 = smul.addr %s259, 16
          %s261 = scalar_lea.hbm %s1, %s260
          %s263 = sshll.u32 %s255, 4
          %s264 = int_to_ptr.vmem [resolvable:$true] %s263
          %266 = dma.hbm_to_vmem [thread:$0]  %s261, 16, %s264, %s253
        $region32: #{tpu_custom_call.1} parent=23 // pred_fallthru
          _
      $region24: #{tpu_custom_call.1} parent=5 // pred_fallthru
        _
      %p267 = scmp.le.s32.totalorder 1, %s19
      %p268 = scmp.lt.s32.totalorder %s19, 3
      %p269 = pnand %p267, %p268
      %p270 = pneg %p269
      // Predicated region
      $region33: #{tpu_custom_call.1} parent=5 // pred_check
        _
      $region34: #{tpu_custom_call.1} parent=5 // pred_check_branch
        %272 = sbr.rel (%p269) target = $region36
      $region35: #{tpu_custom_call.1} parent=5 // pred_region
        %s273 = ssub.s32 %s19, 1
        %s274 = sand.u32 %s62, 1
        %s275 = scalar_lea.sflag [#allocation4], %s274
        %s276 = sand.u32 %s62, 1
        %s277 = smul.addr %s276, 8
        %s278 = scalar_lea.vmem [#allocation3], %s277
        // Predicated region
        $region37: #{tpu_custom_call.1} parent=35 // pred_check
          %p279 = pneg %p75
        $region38: #{tpu_custom_call.1} parent=35 // pred_check_branch
          %281 = sbr.rel (%p279) target = $region40
        $region39: #{tpu_custom_call.1} parent=35 // pred_region
          %282 = dma.done %s275, 128
        $region40: #{tpu_custom_call.1} parent=35 // pred_fallthru
          _
        %s283 = sand.u32 %s24, 1
        %s284 = scalar_lea.sflag [#allocation7], %s283
        %s285 = sand.u32 %s90, 1
        %s286 = scalar_lea.vmem [#allocation6], %s285
        // Predicated region
        $region41: #{tpu_custom_call.1} parent=35 // pred_check
          %p287 = pneg %p103
        $region42: #{tpu_custom_call.1} parent=35 // pred_check_branch
          %289 = sbr.rel (%p287) target = $region44
        $region43: #{tpu_custom_call.1} parent=35 // pred_region
          %290 = dma.done %s284, 16
        $region44: #{tpu_custom_call.1} parent=35 // pred_fallthru
          _
        // Predicated region
        $region45: #{tpu_custom_call.1} parent=35 // pred_check
          %p291 = pneg %p131
        $region46: #{tpu_custom_call.1} parent=35 // pred_check_branch
          %293 = sbr.rel (%p291) target = $region48
        $region47: #{tpu_custom_call.1} parent=35 // pred_region
          %294 = dma.done [#allocation7], 512
        $region48: #{tpu_custom_call.1} parent=35 // pred_fallthru
          _
        %s295 = sand.u32 %s62, 1
        %s296 = scalar_lea.sflag [#allocation4], %s295
        %s297 = sand.u32 %s62, 1
        %s298 = smul.addr %s297, 8
        %s299 = scalar_lea.vmem [#allocation3], %s298
        %p300 = pneg %p75
        %p301 = pneg %p72
        %s302 = sand.u32 %s24, 1
        %s303 = scalar_lea.sflag [#allocation7], %s302
        %s304 = sand.u32 %s90, 1
        %s305 = scalar_lea.vmem [#allocation6], %s304
        %p306 = pneg %p103
        %p307 = pneg %p100
        %p308 = pneg %p131
        %p309 = pneg %p128
        %p310 = scmp.lt.s32.totalorder %s32, 0
        %s311 = scalar_select %p310, %s32, 0
        %s312 = scalar_lea.vmem %s3, %s311
        %p313 = pneg %p157
        %p314 = pneg %p154
        %p315 = pneg %p187
        %p316 = pneg %p184
        %s317 = sand.u32 %s174, 1
        %s318 = scalar_lea.sflag [#allocation5], %s317
        %s319 = sand.u32 %s174, 1
        %s320 = smul.addr %s319, 8
        %s321 = scalar_lea.vmem [#allocation9], %s320
        %s322 = smul.u32 4, %s32
        %p323 = scmp.lt.s32.totalorder %s32, 0
        %s324 = scalar_select %p323, %s32, 0
        %s325 = scalar_lea.vmem %s3, %s324
        %p326 = scmp.eq.s32.totalorder %s33, 0
        // Predicated region
        $region49: #{tpu_custom_call.1} parent=35 // pred_check
          %p327 = pneg %p326
        $region50: #{tpu_custom_call.1} parent=35 // pred_check_branch
          %329 = sbr.rel (%p327) target = $region52
        $region51: #{tpu_custom_call.1} parent=35 // pred_region
          %v330 = vld [vmem:[%s325] sm:$0x1]
          %v332 = vlaneseq
          %v333 = vshrl.u32 %v332, 7
          %v334 = vsub.s32 0, %v333
          %v335 = vrot.slane %v330, %v334
          %vm337 = vcmask 261120
          %338 = vst.msk [vmem:[#allocation2] sm:$0xff] %vm337, %v335
        $region52: #{tpu_custom_call.1} parent=35 // pred_fallthru
          _
        %v339 = vld [vmem:[%s278] sm:$0xff]
        %v340 = vld [vmem:[%s286] sm:$0x1]
        %v342 = vlaneseq
        %v343 = vshrl.u32 %v342, 7
        %v344 = vsub.s32 0, %v343
        %v345 = vrot.slane %v340, %v344
        %v347 = vmul.f32 %v339, %v345
        %v348 = vld [vmem:[#allocation2] sm:$0xff]
        %v349 = vld [vmem:[#allocation8] sm:$0xff]
        %v350 = vld [vmem:[#allocation8 + $0x8] sm:$0xff]
        %v351 = vld [vmem:[#allocation8 + $0x10] sm:$0xff]
        %v352 = vld [vmem:[#allocation8 + $0x18] sm:$0xff]
        %vm353 = vcmask 261120
        %v355 = vsel %vm353, %v347, 0
        %v358 = vsel %vm353, %v349, 0
        %v361 = vsel %vm353, %v350, 0
        %v364 = vsel %vm353, %v351, 0
        %v367 = vsel %vm353, %v352, 0
        %369 = vmatprep.subr.mxu0 0.0
        %370 = vmatpush1.xpose.msra.mxu0 0.0
        %371 = vmatprep.subr.mxu0 0.0
        %372 = vmatpush1.xpose.msra.mxu0 0.0
        %373 = vmatprep.subr.mxu0 0.0
        %374 = vmatpush1.xpose.msra.mxu0 0.0
        %375 = vmatprep.subr.mxu0 0.0
        %376 = vmatpush1.xpose.msra.mxu0 0.0
        %377 = vmatprep.subr.mxu0 0.0
        %378 = vmatpush1.xpose.msra.mxu0 0.0
        %379 = vmatprep.subr.mxu0 0.0
        %380 = vmatpush1.xpose.msra.mxu0 0.0
        %381 = vmatprep.subr.mxu0 0.0
        %382 = vmatpush1.xpose.msra.mxu0 0.0
        %383 = vmatprep.subr.mxu0 0.0
        %384 = vmatpush1.xpose.msra.mxu0 0.0
        %385 = vmatprep.subr.mxu0 0.0
        %386 = vmatpush1.xpose.msra.mxu0 0.0
        %387 = vmatprep.subr.mxu0 0.0
        %388 = vmatpush1.xpose.msra.mxu0 0.0
        %389 = vmatprep.subr.mxu0 0.0
        %390 = vmatpush1.xpose.msra.mxu0 0.0
        %391 = vmatprep.subr.mxu0 0.0
        %392 = vmatpush1.xpose.msra.mxu0 0.0
        %393 = vmatprep.subr.mxu0 0.0
        %394 = vmatpush1.xpose.msra.mxu0 %v367
        %395 = vmatprep.subr.mxu0 0.0
        %396 = vmatpush1.xpose.msra.mxu0 %v364
        %397 = vmatprep.subr.mxu0 0.0
        %398 = vmatpush1.xpose.msra.mxu0 %v361
        %399 = vmatprep.subr.mxu0 0.0
        %400 = vmatpush1.xpose.msra.mxu0 %v358
        %401 = vmatprep.subr.mxu0 0.0
        %402 = vmatpush2.xpose.msra.mxu0 0.0
        %403 = vmatprep.subr.mxu0 0.0
        %404 = vmatpush2.xpose.msra.mxu0 0.0
        %405 = vmatprep.subr.mxu0 0.0
        %406 = vmatpush2.xpose.msra.mxu0 0.0
        %407 = vmatprep.subr.mxu0 0.0
        %408 = vmatpush2.xpose.msra.mxu0 0.0
        %409 = vmatprep.subr.mxu0 0.0
        %410 = vmatpush2.xpose.msra.mxu0 0.0
        %411 = vmatprep.subr.mxu0 0.0
        %412 = vmatpush2.xpose.msra.mxu0 0.0
        %413 = vmatprep.subr.mxu0 0.0
        %414 = vmatpush2.xpose.msra.mxu0 0.0
        %415 = vmatprep.subr.mxu0 0.0
        %416 = vmatpush2.xpose.msra.mxu0 0.0
        %417 = vmatprep.subr.mxu0 0.0
        %418 = vmatpush2.xpose.msra.mxu0 0.0
        %419 = vmatprep.subr.mxu0 0.0
        %420 = vmatpush2.xpose.msra.mxu0 0.0
        %421 = vmatprep.subr.mxu0 0.0
        %422 = vmatpush2.xpose.msra.mxu0 0.0
        %423 = vmatprep.subr.mxu0 0.0
        %424 = vmatpush2.xpose.msra.mxu0 0.0
        %425 = vmatprep.subr.mxu0 0.0
        %426 = vmatpush2.xpose.msra.mxu0 0.0
        %427 = vmatprep.subr.mxu0 0.0
        %428 = vmatpush2.xpose.msra.mxu0 0.0
        %429 = vmatprep.subr.mxu0 0.0
        %430 = vmatpush2.xpose.msra.mxu0 0.0
        %431 = vmatprep.subr.mxu0 0.0
        %432 = vmatpush2.xpose.msra.mxu0 0.0
        %433 = vmatprep.mubr.f32.mxu0 0.0
        %434 = vmatmul.mubr.f32.gmra.mxu0 %v355
        %v435 = vpop.f32.mrf.mxu0
        %v436 = vadd.f32 0.0, %v435
        %v437 = vpop.f32.mrf.mxu0
        %438 = vdwg.mxu0
        %v439 = vadd.f32 %v348, %v436
        %440 = vst.msk [vmem:[#allocation2] sm:$0xff] %vm353, %v439
        // Predicated region
        $region53: #{tpu_custom_call.1} parent=35 // pred_check
          %p441 = pneg %p326
        $region54: #{tpu_custom_call.1} parent=35 // pred_check_branch
          %443 = sbr.rel (%p441) target = $region56
        $region55: #{tpu_custom_call.1} parent=35 // pred_region
          %v444 = vld [vmem:[#allocation2] sm:$0xff]
          %445 = vst.msk [vmem:[%s321] sm:$0xff] %vm353, %v444
        $region56: #{tpu_custom_call.1} parent=35 // pred_fallthru
          _
        %s446 = sand.u32 %s174, 1
        %s447 = scalar_lea.sflag [#allocation5], %s446
        %s448 = sand.u32 %s174, 1
        %s449 = smul.addr %s448, 8
        %s450 = scalar_lea.vmem [#allocation9], %s449
        // Predicated region
        $region57: #{tpu_custom_call.1} parent=35 // pred_check
          %p451 = pneg %p184
        $region58: #{tpu_custom_call.1} parent=35 // pred_check_branch
          %453 = sbr.rel (%p451) target = $region60
        $region59: #{tpu_custom_call.1} parent=35 // pred_region
          %s455 = ssub.s32 128, 128
          %456 = vsyncadd %s447, %s455
          %s457 = sadd.s32 %s32, %s31
          %s458 = sadd.s32 %s457, %s30
          %s459 = smul.addr %s458, 128
          %s460 = scalar_lea.hbm %s4, %s459
          %s462 = sshll.u32 %s450, 4
          %s463 = int_to_ptr.vmem [resolvable:$true] %s462
          %465 = dma.vmem_to_hbm [thread:$0]  %s463, 128, %s460, %s447
        $region60: #{tpu_custom_call.1} parent=35 // pred_fallthru
          _
      $region36: #{tpu_custom_call.1} parent=5 // pred_fallthru
        _
      %p466 = scmp.le.s32.totalorder 2, %s19
      // Predicated region
      $region61: #{tpu_custom_call.1} parent=5 // pred_check
        %p467 = pneg %p466
      $region62: #{tpu_custom_call.1} parent=5 // pred_check_branch
        %469 = sbr.rel (%p467) target = $region64
      $region63: #{tpu_custom_call.1} parent=5 // pred_region
        %s470 = ssub.s32 %s19, 2
        // Predicated region
        $region65: #{tpu_custom_call.1} parent=63 // pred_check
          %p471 = pneg %p190
        $region66: #{tpu_custom_call.1} parent=63 // pred_check_branch
          %473 = sbr.rel (%p471) target = $region68
        $region67: #{tpu_custom_call.1} parent=63 // pred_region
          %s474 = sand.u32 %s175, 1
          %s475 = scalar_lea.sflag [#allocation5], %s474
          %s476 = sand.u32 %s175, 1
          %s477 = smul.addr %s476, 8
          %s478 = scalar_lea.vmem [#allocation9], %s477
          %479 = dma.done %s475, 128
        $region68: #{tpu_custom_call.1} parent=63 // pred_fallthru
          _
      $region64: #{tpu_custom_call.1} parent=5 // pred_fallthru
        _
    $region6: #{tpu_custom_call.1} parent=1 // loop_footer
      %s23 = sadd.s32 1, %s19
    $region7: #{tpu_custom_call.1} parent=1 // loop_footer_branch
      %18 = sbr.rel target = $region3
    $region8: #{tpu_custom_call.1} parent=1 // loop_exit
      _
    %480 = vsyncpa [#allocation4], 1
    %s481 = scalar_lea.sflag [#allocation4], 1
    %482 = vsyncpa %s481, 1
    %483 = vsyncpa [#allocation7], 1
    %s484 = scalar_lea.sflag [#allocation7], 1
    %485 = vsyncpa %s484, 1
    %486 = vsyncpa [#allocation5], 1
    %s487 = scalar_lea.sflag [#allocation5], 1
    %488 = vsyncpa %s487, 1

</llo_original>
